<compile_context>
chip_gen: v5e
topology: v5e:2x2
jax: 0.10.0
libtpu: 0.0.40
codegen_flags: <defaults>
</compile_context>

<pallas_src>
import functools

import jax
import jax.numpy as jnp
from jax import lax
from jax.experimental import pallas as pl
from jax.experimental.pallas import tpu as pltpu


def _spike_kernel(x_ref, w_ref, b_ref, out_ref, *, taps_off, threshold,
                  sim_length, chunk, use_closed_form):
    """One image per grid step.

    x_ref:   [C, l_in]      zero-padded, flattened input plane (lane = pixel)
    w_ref:   [KH*KW, OC, C] per-tap weight matrices
    b_ref:   [OC, 1]        bias + enable_shift constant (folded in wrapper)
    out_ref: [OC, n_out]    spike-sum output (lane = pixel, padded width)
    """
    oc, n_out = out_ref.shape
    thr = jnp.float32(threshold)

    # Strip-mine the lane dimension so the unrolled T-loop carries stay small.
    for c0 in range(0, n_out, chunk):
        cw = min(chunk, n_out - c0)

        # --- conv + bias + shift for this lane chunk (in-kernel "im2col") ---
        x = b_ref[...]                                   # [OC, 1] -> broadcasts
        for t, off in enumerate(taps_off):
            patch = x_ref[:, off + c0: off + c0 + cw]    # [C, cw] shifted view
            x = x + jnp.dot(w_ref[t], patch,
                            preferred_element_type=jnp.float32)

        # --- T-step IF-neuron recurrence on [OC, cw] ---
        if use_closed_form:
            # x is constant over t => spike count = clip(floor(T*x/thr), 0, T).
            # Not bit-for-bit with the loop at exact threshold boundaries.
            scale = jnp.float32(float(sim_length) / float(threshold))
            cnt = jnp.clip(jnp.floor(x * scale), 0.0, jnp.float32(sim_length))
            out = thr * cnt
        else:
            mem0 = jnp.zeros_like(x)
            out0 = jnp.zeros_like(x)

            def body(_, carry):
                mem, out = carry
                mem = mem + x
                spike = jnp.where(mem >= thr, thr, jnp.float32(0.0))
                return (mem - spike, out + spike)

            _, out = lax.fori_loop(0, sim_length, body, (mem0, out0),
                                   unroll=True)

        out_ref[:, c0:c0 + cw] = out


def spike_model_forward(x_nchw, weight, bias, *, threshold, sim_length,
                        stride=1, padding=1, chunk=512, use_closed_form=False):
    """x_nchw: [B, C, H, W] f32; weight: [OC, C, KH, KW]; bias: [OC]."""
    B, C, H, W = x_nchw.shape
    OC, Cw, KH, KW = weight.shape
    assert Cw == C and stride == 1 and padding == 1 and KH == 3 and KW == 3, \
        "synthetic kernel fixed at 3x3 / stride 1 / padding 1"

    Hp, Wp = H + 2 * padding, W + 2 * padding
    n_valid = H * Wp                          # lanes whose (h,w) rows are real
    n_out = ((n_valid + 127) // 128) * 128    # lane-dense output width
    max_off = (KH - 1) * Wp + (KW - 1)        # largest in-kernel lane shift
    l_in = n_out + max_off                    # padded plane length per image

    # --- cheap wrapper prep: spatial zero-pad + flatten (no 9x expansion) ---
    xp = jnp.pad(x_nchw.astype(jnp.float32),
                 ((0, 0), (0, 0), (padding, padding), (padding, padding)))
    x_flat = xp.reshape(B, C, Hp * Wp)
    x_flat = jnp.pad(x_flat, ((0, 0), (0, 0), (0, l_in - Hp * Wp)))

    # Per-tap weight matrices [KH*KW, OC, C]; tap t = kh*KW + kw.
    w_taps = weight.astype(jnp.float32).transpose(2, 3, 0, 1).reshape(KH * KW, OC, C)
    # Bias + enable_shift constant folded into one vector.
    b_eff = (bias.astype(jnp.float32)
             + jnp.float32(threshold * 0.5 / sim_length)).reshape(OC, 1)

    taps_off = tuple(kh * Wp + kw for kh in range(KH) for kw in range(KW))

    kernel = functools.partial(
        _spike_kernel, taps_off=taps_off, threshold=float(threshold),
        sim_length=int(sim_length), chunk=int(chunk),
        use_closed_form=bool(use_closed_form))

    cost = pl.CostEstimate(
        flops=B * (2 * KH * KW * OC * C * n_out + 5 * sim_length * OC * n_out),
        transcendentals=0,
        bytes_accessed=4 * (B * C * l_in + KH * KW * OC * C + OC + B * OC * n_out),
    )

    out = pl.pallas_call(
        kernel,
        out_shape=jax.ShapeDtypeStruct((B, OC, n_out), jnp.float32),
        grid=(B,),
        in_specs=[
            pl.BlockSpec((None, C, l_in), lambda b: (b, 0, 0)),       # input plane
            pl.BlockSpec((KH * KW, OC, C), lambda b: (0, 0, 0)),      # tap weights (resident)
            pl.BlockSpec((OC, 1), lambda b: (0, 0)),                  # fused bias+shift
        ],
        out_specs=pl.BlockSpec((None, OC, n_out), lambda b: (b, 0, 0)),
        compiler_params=pltpu.CompilerParams(
            dimension_semantics=("parallel",),    # B>=2 -> both v7x TensorCores busy
        ),
        cost_estimate=cost,
    )(x_flat, w_taps, b_eff)

    # [B, OC, n_out] -> keep valid rows (stride Wp), drop the 2 pad cols per row.
    out = out[:, :, :n_valid].reshape(B, OC, H, Wp)[:, :, :, :W]
    return out


def _reference(x_nchw, weight, bias, *, threshold, sim_length):
    """Pure-JAX reference mirroring the PyTorch semantics."""
    conv = lax.conv_general_dilated(
        x_nchw.astype(jnp.float32), weight.astype(jnp.float32),
        window_strides=(1, 1), padding=((1, 1), (1, 1)),
        dimension_numbers=("NCHW", "OIHW", "NCHW"))
    conv = conv + bias.reshape(1, -1, 1, 1)
    x = conv + threshold * 0.5 / sim_length
    mem = jnp.zeros_like(x)
    out = jnp.zeros_like(x)
    for _ in range(sim_length):
        mem = mem + x
        spike = jnp.where(mem >= threshold, threshold, 0.0)
        mem = mem - spike
        out = out + spike
    return out


if __name__ == "__main__":
    key = jax.random.PRNGKey(0)
    k_x, k_w, k_b = jax.random.split(key, 3)

    B, C, H, W = 2, 4, 16, 16
    OC, KH, KW = 8, 3, 3
    T = 8
    THRESHOLD = 1.0

    x = jax.random.normal(k_x, (B, C, H, W), dtype=jnp.float32)
    weight = 0.1 * jax.random.normal(k_w, (OC, C, KH, KW), dtype=jnp.float32)
    bias = 0.05 * jax.random.normal(k_b, (OC,), dtype=jnp.float32)

    out = spike_model_forward(x, weight, bias, threshold=THRESHOLD, sim_length=T)
    out = jax.block_until_ready(out)

    ref = _reference(x, weight, bias, threshold=THRESHOLD, sim_length=T)
    assert out.shape == (B, OC, H, W)

    diff = jnp.abs(out - ref)
    ok = bool(jnp.all(diff <= 1e-4))
    if not ok:
        # Tolerate (extremely rare) threshold-edge spike flips caused by f32
        # accumulation-order differences between the 9-tap MXU sum and XLA conv:
        # any mismatch must be a tiny fraction and a multiple of the threshold.
        frac = float(jnp.mean((diff > 1e-4).astype(jnp.float32)))
        mult = diff / THRESHOLD
        near_mult = jnp.abs(mult - jnp.round(mult)) <= 1e-3
        ok = (frac < 1e-3) and bool(jnp.all(jnp.where(diff > 1e-4, near_mult, True)))
    assert ok, "mismatch vs reference"

    print("KERNEL_OK")
</pallas_src>

<mosaic_0001>
module attributes {stable_mosaic.version = 11 : i64} {
  func.func @_spike_kernel(%arg0: i32, %arg1: memref<1x4x422xf32, #tpu.memory_space<vmem>>, %arg2: memref<9x8x4xf32, #tpu.memory_space<vmem>>, %arg3: memref<8x1xf32, #tpu.memory_space<vmem>>, %arg4: memref<1x8x384xf32, #tpu.memory_space<vmem>>) attributes {dimension_semantics = [#tpu.dimension_semantics<parallel>], iteration_bounds = array<i64: 2>, scalar_prefetch = 0 : i64, scratch_operands = 0 : i64, tpu.core_type = #tpu.core_type<tc>, window_params = [{transform_indices = @transform_0, window_bounds = array<i64: 1, 4, 422>}, {pipeline_mode = #tpu.pipeline_mode<synchronous>, transform_indices = @transform_1, window_bounds = array<i64: 9, 8, 4>}, {pipeline_mode = #tpu.pipeline_mode<synchronous>, transform_indices = @transform_2, window_bounds = array<i64: 8, 1>}, {transform_indices = @transform_3, window_bounds = array<i64: 1, 8, 384>}]} {
    %c0 = arith.constant 0 : index
    %c0_0 = arith.constant 0 : index
    %0 = vector.load %arg3[%c0, %c0_0] : memref<8x1xf32, #tpu.memory_space<vmem>>, vector<8x1xf32>
    %c0_1 = arith.constant 0 : index
    %c0_2 = arith.constant 0 : index
    %c0_3 = arith.constant 0 : index
    %1 = vector.load %arg1[%c0_1, %c0_2, %c0_3] : memref<1x4x422xf32, #tpu.memory_space<vmem>>, vector<1x4x384xf32>
    %2 = vector.shape_cast %1 : vector<1x4x384xf32> to vector<4x384xf32>
    %c0_4 = arith.constant 0 : index
    %c0_5 = arith.constant 0 : index
    %c0_6 = arith.constant 0 : index
    %3 = vector.load %arg2[%c0_4, %c0_5, %c0_6] : memref<9x8x4xf32, #tpu.memory_space<vmem>>, vector<1x8x4xf32>
    %4 = vector.shape_cast %3 : vector<1x8x4xf32> to vector<8x4xf32>
    %cst = arith.constant dense<0.000000e+00> : vector<8x384xf32>
    %5 = tpu.matmul %4, %2, %cst {dimension_numbers = #tpu.dot_dimension_numbers<[1], [0], [0], [1], [0, 0, 1, 1], [], []>} : vector<8x4xf32>, vector<4x384xf32>, vector<8x384xf32> -> vector<8x384xf32>
    %6 = vector.broadcast %0 : vector<8x1xf32> to vector<8x384xf32>
    %7 = arith.addf %6, %5 : vector<8x384xf32>
    %c0_7 = arith.constant 0 : index
    %c0_8 = arith.constant 0 : index
    %c1 = arith.constant 1 : index
    %8 = vector.load %arg1[%c0_7, %c0_8, %c1] : memref<1x4x422xf32, #tpu.memory_space<vmem>>, vector<1x4x384xf32>
    %9 = vector.shape_cast %8 : vector<1x4x384xf32> to vector<4x384xf32>
    %c1_9 = arith.constant 1 : index
    %c0_10 = arith.constant 0 : index
    %c0_11 = arith.constant 0 : index
    %10 = vector.load %arg2[%c1_9, %c0_10, %c0_11] : memref<9x8x4xf32, #tpu.memory_space<vmem>>, vector<1x8x4xf32>
    %11 = vector.shape_cast %10 : vector<1x8x4xf32> to vector<8x4xf32>
    %cst_12 = arith.constant dense<0.000000e+00> : vector<8x384xf32>
    %12 = tpu.matmul %11, %9, %cst_12 {dimension_numbers = #tpu.dot_dimension_numbers<[1], [0], [0], [1], [0, 0, 1, 1], [], []>} : vector<8x4xf32>, vector<4x384xf32>, vector<8x384xf32> -> vector<8x384xf32>
    %13 = arith.addf %7, %12 : vector<8x384xf32>
    %c0_13 = arith.constant 0 : index
    %c0_14 = arith.constant 0 : index
    %c2 = arith.constant 2 : index
    %14 = vector.load %arg1[%c0_13, %c0_14, %c2] : memref<1x4x422xf32, #tpu.memory_space<vmem>>, vector<1x4x384xf32>
    %15 = vector.shape_cast %14 : vector<1x4x384xf32> to vector<4x384xf32>
    %c2_15 = arith.constant 2 : index
    %c0_16 = arith.constant 0 : index
    %c0_17 = arith.constant 0 : index
    %16 = vector.load %arg2[%c2_15, %c0_16, %c0_17] : memref<9x8x4xf32, #tpu.memory_space<vmem>>, vector<1x8x4xf32>
    %17 = vector.shape_cast %16 : vector<1x8x4xf32> to vector<8x4xf32>
    %cst_18 = arith.constant dense<0.000000e+00> : vector<8x384xf32>
    %18 = tpu.matmul %17, %15, %cst_18 {dimension_numbers = #tpu.dot_dimension_numbers<[1], [0], [0], [1], [0, 0, 1, 1], [], []>} : vector<8x4xf32>, vector<4x384xf32>, vector<8x384xf32> -> vector<8x384xf32>
    %19 = arith.addf %13, %18 : vector<8x384xf32>
    %c0_19 = arith.constant 0 : index
    %c0_20 = arith.constant 0 : index
    %c18 = arith.constant 18 : index
    %20 = vector.load %arg1[%c0_19, %c0_20, %c18] : memref<1x4x422xf32, #tpu.memory_space<vmem>>, vector<1x4x384xf32>
    %21 = vector.shape_cast %20 : vector<1x4x384xf32> to vector<4x384xf32>
    %c3 = arith.constant 3 : index
    %c0_21 = arith.constant 0 : index
    %c0_22 = arith.constant 0 : index
    %22 = vector.load %arg2[%c3, %c0_21, %c0_22] : memref<9x8x4xf32, #tpu.memory_space<vmem>>, vector<1x8x4xf32>
    %23 = vector.shape_cast %22 : vector<1x8x4xf32> to vector<8x4xf32>
    %cst_23 = arith.constant dense<0.000000e+00> : vector<8x384xf32>
    %24 = tpu.matmul %23, %21, %cst_23 {dimension_numbers = #tpu.dot_dimension_numbers<[1], [0], [0], [1], [0, 0, 1, 1], [], []>} : vector<8x4xf32>, vector<4x384xf32>, vector<8x384xf32> -> vector<8x384xf32>
    %25 = arith.addf %19, %24 : vector<8x384xf32>
    %c0_24 = arith.constant 0 : index
    %c0_25 = arith.constant 0 : index
    %c19 = arith.constant 19 : index
    %26 = vector.load %arg1[%c0_24, %c0_25, %c19] : memref<1x4x422xf32, #tpu.memory_space<vmem>>, vector<1x4x384xf32>
    %27 = vector.shape_cast %26 : vector<1x4x384xf32> to vector<4x384xf32>
    %c4 = arith.constant 4 : index
    %c0_26 = arith.constant 0 : index
    %c0_27 = arith.constant 0 : index
    %28 = vector.load %arg2[%c4, %c0_26, %c0_27] : memref<9x8x4xf32, #tpu.memory_space<vmem>>, vector<1x8x4xf32>
    %29 = vector.shape_cast %28 : vector<1x8x4xf32> to vector<8x4xf32>
    %cst_28 = arith.constant dense<0.000000e+00> : vector<8x384xf32>
    %30 = tpu.matmul %29, %27, %cst_28 {dimension_numbers = #tpu.dot_dimension_numbers<[1], [0], [0], [1], [0, 0, 1, 1], [], []>} : vector<8x4xf32>, vector<4x384xf32>, vector<8x384xf32> -> vector<8x384xf32>
    %31 = arith.addf %25, %30 : vector<8x384xf32>
    %c0_29 = arith.constant 0 : index
    %c0_30 = arith.constant 0 : index
    %c20 = arith.constant 20 : index
    %32 = vector.load %arg1[%c0_29, %c0_30, %c20] : memref<1x4x422xf32, #tpu.memory_space<vmem>>, vector<1x4x384xf32>
    %33 = vector.shape_cast %32 : vector<1x4x384xf32> to vector<4x384xf32>
    %c5 = arith.constant 5 : index
    %c0_31 = arith.constant 0 : index
    %c0_32 = arith.constant 0 : index
    %34 = vector.load %arg2[%c5, %c0_31, %c0_32] : memref<9x8x4xf32, #tpu.memory_space<vmem>>, vector<1x8x4xf32>
    %35 = vector.shape_cast %34 : vector<1x8x4xf32> to vector<8x4xf32>
    %cst_33 = arith.constant dense<0.000000e+00> : vector<8x384xf32>
    %36 = tpu.matmul %35, %33, %cst_33 {dimension_numbers = #tpu.dot_dimension_numbers<[1], [0], [0], [1], [0, 0, 1, 1], [], []>} : vector<8x4xf32>, vector<4x384xf32>, vector<8x384xf32> -> vector<8x384xf32>
    %37 = arith.addf %31, %36 : vector<8x384xf32>
    %c0_34 = arith.constant 0 : index
    %c0_35 = arith.constant 0 : index
    %c36 = arith.constant 36 : index
    %38 = vector.load %arg1[%c0_34, %c0_35, %c36] : memref<1x4x422xf32, #tpu.memory_space<vmem>>, vector<1x4x384xf32>
    %39 = vector.shape_cast %38 : vector<1x4x384xf32> to vector<4x384xf32>
    %c6 = arith.constant 6 : index
    %c0_36 = arith.constant 0 : index
    %c0_37 = arith.constant 0 : index
    %40 = vector.load %arg2[%c6, %c0_36, %c0_37] : memref<9x8x4xf32, #tpu.memory_space<vmem>>, vector<1x8x4xf32>
    %41 = vector.shape_cast %40 : vector<1x8x4xf32> to vector<8x4xf32>
    %cst_38 = arith.constant dense<0.000000e+00> : vector<8x384xf32>
    %42 = tpu.matmul %41, %39, %cst_38 {dimension_numbers = #tpu.dot_dimension_numbers<[1], [0], [0], [1], [0, 0, 1, 1], [], []>} : vector<8x4xf32>, vector<4x384xf32>, vector<8x384xf32> -> vector<8x384xf32>
    %43 = arith.addf %37, %42 : vector<8x384xf32>
    %c0_39 = arith.constant 0 : index
    %c0_40 = arith.constant 0 : index
    %c37 = arith.constant 37 : index
    %44 = vector.load %arg1[%c0_39, %c0_40, %c37] : memref<1x4x422xf32, #tpu.memory_space<vmem>>, vector<1x4x384xf32>
    %45 = vector.shape_cast %44 : vector<1x4x384xf32> to vector<4x384xf32>
    %c7 = arith.constant 7 : index
    %c0_41 = arith.constant 0 : index
    %c0_42 = arith.constant 0 : index
    %46 = vector.load %arg2[%c7, %c0_41, %c0_42] : memref<9x8x4xf32, #tpu.memory_space<vmem>>, vector<1x8x4xf32>
    %47 = vector.shape_cast %46 : vector<1x8x4xf32> to vector<8x4xf32>
    %cst_43 = arith.constant dense<0.000000e+00> : vector<8x384xf32>
    %48 = tpu.matmul %47, %45, %cst_43 {dimension_numbers = #tpu.dot_dimension_numbers<[1], [0], [0], [1], [0, 0, 1, 1], [], []>} : vector<8x4xf32>, vector<4x384xf32>, vector<8x384xf32> -> vector<8x384xf32>
    %49 = arith.addf %43, %48 : vector<8x384xf32>
    %c0_44 = arith.constant 0 : index
    %c0_45 = arith.constant 0 : index
    %c38 = arith.constant 38 : index
    %50 = vector.load %arg1[%c0_44, %c0_45, %c38] : memref<1x4x422xf32, #tpu.memory_space<vmem>>, vector<1x4x384xf32>
    %51 = vector.shape_cast %50 : vector<1x4x384xf32> to vector<4x384xf32>
    %c8 = arith.constant 8 : index
    %c0_46 = arith.constant 0 : index
    %c0_47 = arith.constant 0 : index
    %52 = vector.load %arg2[%c8, %c0_46, %c0_47] : memref<9x8x4xf32, #tpu.memory_space<vmem>>, vector<1x8x4xf32>
    %53 = vector.shape_cast %52 : vector<1x8x4xf32> to vector<8x4xf32>
    %cst_48 = arith.constant dense<0.000000e+00> : vector<8x384xf32>
    %54 = tpu.matmul %53, %51, %cst_48 {dimension_numbers = #tpu.dot_dimension_numbers<[1], [0], [0], [1], [0, 0, 1, 1], [], []>} : vector<8x4xf32>, vector<4x384xf32>, vector<8x384xf32> -> vector<8x384xf32>
    %55 = arith.addf %49, %54 : vector<8x384xf32>
    %cst_49 = arith.constant 0.000000e+00 : f32
    %56 = vector.broadcast %cst_49 : f32 to vector<8x384xf32>
    %cst_50 = arith.constant 0.000000e+00 : f32
    %57 = vector.broadcast %cst_50 : f32 to vector<8x384xf32>
    %cst_51 = arith.constant 1.000000e+00 : f32
    %c0_i32 = arith.constant 0 : i32
    %58 = arith.addf %56, %55 : vector<8x384xf32>
    %59 = vector.broadcast %cst_51 : f32 to vector<8x384xf32>
    %60 = arith.cmpf oge, %58, %59 : vector<8x384xf32>
    %cst_52 = arith.constant 0.000000e+00 : f32
    %61 = vector.broadcast %cst_51 : f32 to vector<8x384xf32>
    %62 = vector.broadcast %cst_52 : f32 to vector<8x384xf32>
    %63 = arith.select %60, %61, %62 : vector<8x384xi1>, vector<8x384xf32>
    %64 = arith.subf %58, %63 : vector<8x384xf32>
    %65 = arith.addf %57, %63 : vector<8x384xf32>
    %c1_i32 = arith.constant 1 : i32
    %66 = arith.addf %64, %55 : vector<8x384xf32>
    %67 = vector.broadcast %cst_51 : f32 to vector<8x384xf32>
    %68 = arith.cmpf oge, %66, %67 : vector<8x384xf32>
    %cst_53 = arith.constant 0.000000e+00 : f32
    %69 = vector.broadcast %cst_51 : f32 to vector<8x384xf32>
    %70 = vector.broadcast %cst_53 : f32 to vector<8x384xf32>
    %71 = arith.select %68, %69, %70 : vector<8x384xi1>, vector<8x384xf32>
    %72 = arith.subf %66, %71 : vector<8x384xf32>
    %73 = arith.addf %65, %71 : vector<8x384xf32>
    %c2_i32 = arith.constant 2 : i32
    %74 = arith.addf %72, %55 : vector<8x384xf32>
    %75 = vector.broadcast %cst_51 : f32 to vector<8x384xf32>
    %76 = arith.cmpf oge, %74, %75 : vector<8x384xf32>
    %cst_54 = arith.constant 0.000000e+00 : f32
    %77 = vector.broadcast %cst_51 : f32 to vector<8x384xf32>
    %78 = vector.broadcast %cst_54 : f32 to vector<8x384xf32>
    %79 = arith.select %76, %77, %78 : vector<8x384xi1>, vector<8x384xf32>
    %80 = arith.subf %74, %79 : vector<8x384xf32>
    %81 = arith.addf %73, %79 : vector<8x384xf32>
    %c3_i32 = arith.constant 3 : i32
    %82 = arith.addf %80, %55 : vector<8x384xf32>
    %83 = vector.broadcast %cst_51 : f32 to vector<8x384xf32>
    %84 = arith.cmpf oge, %82, %83 : vector<8x384xf32>
    %cst_55 = arith.constant 0.000000e+00 : f32
    %85 = vector.broadcast %cst_51 : f32 to vector<8x384xf32>
    %86 = vector.broadcast %cst_55 : f32 to vector<8x384xf32>
    %87 = arith.select %84, %85, %86 : vector<8x384xi1>, vector<8x384xf32>
    %88 = arith.subf %82, %87 : vector<8x384xf32>
    %89 = arith.addf %81, %87 : vector<8x384xf32>
    %c4_i32 = arith.constant 4 : i32
    %90 = arith.addf %88, %55 : vector<8x384xf32>
    %91 = vector.broadcast %cst_51 : f32 to vector<8x384xf32>
    %92 = arith.cmpf oge, %90, %91 : vector<8x384xf32>
    %cst_56 = arith.constant 0.000000e+00 : f32
    %93 = vector.broadcast %cst_51 : f32 to vector<8x384xf32>
    %94 = vector.broadcast %cst_56 : f32 to vector<8x384xf32>
    %95 = arith.select %92, %93, %94 : vector<8x384xi1>, vector<8x384xf32>
    %96 = arith.subf %90, %95 : vector<8x384xf32>
    %97 = arith.addf %89, %95 : vector<8x384xf32>
    %c5_i32 = arith.constant 5 : i32
    %98 = arith.addf %96, %55 : vector<8x384xf32>
    %99 = vector.broadcast %cst_51 : f32 to vector<8x384xf32>
    %100 = arith.cmpf oge, %98, %99 : vector<8x384xf32>
    %cst_57 = arith.constant 0.000000e+00 : f32
    %101 = vector.broadcast %cst_51 : f32 to vector<8x384xf32>
    %102 = vector.broadcast %cst_57 : f32 to vector<8x384xf32>
    %103 = arith.select %100, %101, %102 : vector<8x384xi1>, vector<8x384xf32>
    %104 = arith.subf %98, %103 : vector<8x384xf32>
    %105 = arith.addf %97, %103 : vector<8x384xf32>
    %c6_i32 = arith.constant 6 : i32
    %106 = arith.addf %104, %55 : vector<8x384xf32>
    %107 = vector.broadcast %cst_51 : f32 to vector<8x384xf32>
    %108 = arith.cmpf oge, %106, %107 : vector<8x384xf32>
    %cst_58 = arith.constant 0.000000e+00 : f32
    %109 = vector.broadcast %cst_51 : f32 to vector<8x384xf32>
    %110 = vector.broadcast %cst_58 : f32 to vector<8x384xf32>
    %111 = arith.select %108, %109, %110 : vector<8x384xi1>, vector<8x384xf32>
    %112 = arith.subf %106, %111 : vector<8x384xf32>
    %113 = arith.addf %105, %111 : vector<8x384xf32>
    %c7_i32 = arith.constant 7 : i32
    %114 = arith.addf %112, %55 : vector<8x384xf32>
    %115 = vector.broadcast %cst_51 : f32 to vector<8x384xf32>
    %116 = arith.cmpf oge, %114, %115 : vector<8x384xf32>
    %cst_59 = arith.constant 0.000000e+00 : f32
    %117 = vector.broadcast %cst_51 : f32 to vector<8x384xf32>
    %118 = vector.broadcast %cst_59 : f32 to vector<8x384xf32>
    %119 = arith.select %116, %117, %118 : vector<8x384xi1>, vector<8x384xf32>
    %120 = arith.subf %114, %119 : vector<8x384xf32>
    %121 = arith.addf %113, %119 : vector<8x384xf32>
    %c0_60 = arith.constant 0 : index
    %c0_61 = arith.constant 0 : index
    %c0_62 = arith.constant 0 : index
    %122 = vector.load %arg4[%c0_60, %c0_61, %c0_62] : memref<1x8x384xf32, #tpu.memory_space<vmem>>, vector<1x8x384xf32>
    %123 = vector.shape_cast %122 : vector<1x8x384xf32> to vector<8x384xf32>
    %124 = vector.shape_cast %121 : vector<8x384xf32> to vector<1x8x384xf32>
    tpu.vector_store %arg4[%c0_60, %c0_61, %c0_62], %124 {strides = array<i32>} : memref<1x8x384xf32, #tpu.memory_space<vmem>>, vector<1x8x384xf32>,
    return
  }
  func.func @transform_0(%arg0: i32) -> (i32, i32, i32) {
    %c0_i32 = arith.constant 0 : i32
    %c0_i32_0 = arith.constant 0 : i32
    %c0_i32_1 = arith.constant 0 : i32
    return %arg0, %c0_i32, %c0_i32_0 : i32, i32, i32
  }
  func.func @transform_1(%arg0: i32) -> (i32, i32, i32) {
    %c0_i32 = arith.constant 0 : i32
    %c0_i32_0 = arith.constant 0 : i32
    %c0_i32_1 = arith.constant 0 : i32
    %c0_i32_2 = arith.constant 0 : i32
    return %c0_i32, %c0_i32_0, %c0_i32_1 : i32, i32, i32
  }
  func.func @transform_2(%arg0: i32) -> (i32, i32) {
    %c0_i32 = arith.constant 0 : i32
    %c0_i32_0 = arith.constant 0 : i32
    %c0_i32_1 = arith.constant 0 : i32
    return %c0_i32, %c0_i32_0 : i32, i32
  }
  func.func @transform_3(%arg0: i32) -> (i32, i32, i32) {
    %c0_i32 = arith.constant 0 : i32
    %c0_i32_0 = arith.constant 0 : i32
    %c0_i32_1 = arith.constant 0 : i32
    return %arg0, %c0_i32, %c0_i32_0 : i32, i32, i32
  }
}

</mosaic_0001>

<llo_original>
// kernel: tpu_custom_call.1
$region0: #{tpu_custom_call.1}
  #allocation0 [shape = 'u32[]', space=smem, size = 0x4, offset = 0x4, fixed_abs, tag = 'smem constant byte address 0x4 - core index']
  #allocation1 [shape = 'u32[72,128]{1,0:T(1,128)}', space=vmem, size = 0x9000, scoped, tag = 'internal scratch']
  %s0 = inlined_call_operand.vmem [shape: f32[2,4,422], index: 0, kind: input, shape index: {}]
  %s1 = inlined_call_operand.vmem [shape: f32[9,8,4], index: 1, kind: input, shape index: {}]
  %s2 = inlined_call_operand.vmem [shape: f32[8,1], index: 2, kind: input, shape index: {}]
  %s3 = inlined_call_operand.hbm [shape: f32[2,8,384], index: 3, kind: output, shape index: {}]
  %s4 = sld [smem:[#allocation0]]
  $region45: #{tpu_custom_call.1} parent=0
    _
  %s6 = ssub.s32 1, %s4
  %s7 = scalar_select 0, %s6, %s4
  $region1: #{tpu_custom_call.1} parent=0
    #allocation2 [shape = 'u8[24576]{0}', space=vmem, size = 0x6000, scoped, tag = 'output window, operand 0']
    #allocation3 [shape = 's32[2]{0}', space=sflag, size = 0x8, scoped, tag = 'scoped memory for tpu_custom_call.1']
    %8 = vsyncpa [#allocation3], 0
    %s9 = scalar_lea.sflag [#allocation3], 1
    %10 = vsyncpa %s9, 0
    loop: start=0, step=1, limit=4
    $region2: #{tpu_custom_call.1} parent=1 // loop_pre_header
      _
    $region3: #{tpu_custom_call.1} parent=1 // loop_header
      %s12 = sphi 0, %s16
      %p13 = scmp.ge.s32.totalorder %s12, 4
      %s22 = sphi 0, %s24
      %s25 = sphi 0, %s22
      %s26 = sphi 0, %s25
      %s42 = sphi 0, %s26
      %s46 = sphi 0, %s46
      %s48 = sphi 0, %s46
      %s49 = sphi 0, %s48
      %s63 = sphi 0, %s49
      %s67 = sphi 0, %s67
      %s69 = sphi 0, %s67
      %s70 = sphi 0, %s69
      %s84 = sphi 0, %s70
      %s90 = sphi 0, %s92
      %s93 = sphi 0, %s90
      %s94 = sphi 0, %s93
      %s110 = sphi 0, %s94
    $region4: #{tpu_custom_call.1} parent=1 // loop_header_branch
      %15 = sbr.rel (%p13) target = $region8
    $region5: #{tpu_custom_call.1} parent=1 // loop_body
      %s17 = ssub.s32 %s12, 1
      %s18 = ssub.s32 %s12, 2
      %s19 = sadd.s32 %s12, 1
      %s20 = ssub.s32 %s12, %s19
      %p21 = scmp.eq.s32.totalorder %s20, 0
      %s23 = sadd.s32 %s22, 1
      %s24 = scalar_select %p21, %s22, %s23
      %p27 = pneg %p21
      %p28 = scmp.eq.s32.totalorder %s12, 1
      %p29 = por %p27, %p28
      %p30 = scmp.ne.s32.totalorder %s22, %s25
      %p31 = scmp.eq.s32.totalorder %s12, 0
      %p32 = por %p30, %p31
      %p33 = scmp.ne.s32.totalorder %s22, %s25
      %p34 = scmp.eq.s32.totalorder %s17, 1
      %p35 = por %p33, %p34
      %p36 = scmp.ne.s32.totalorder %s25, %s26
      %p37 = scmp.eq.s32.totalorder %s17, 0
      %p38 = por %p36, %p37
      %p39 = scmp.ne.s32.totalorder %s25, %s26
      %p40 = scmp.eq.s32.totalorder %s18, 1
      %p41 = por %p39, %p40
      %p43 = scmp.ne.s32.totalorder %s26, %s42
      %p44 = scmp.eq.s32.totalorder %s18, 0
      %p45 = por %p43, %p44
      %s47 = sadd.s32 %s46, 1
      %p50 = scmp.eq.s32.totalorder %s12, 1
      %p51 = scmp.ne.s32.totalorder %s46, %s48
      %p52 = scmp.eq.s32.totalorder %s12, 0
      %p53 = por %p51, %p52
      %p54 = scmp.ne.s32.totalorder %s46, %s48
      %p55 = scmp.eq.s32.totalorder %s17, 1
      %p56 = por %p54, %p55
      %p57 = scmp.ne.s32.totalorder %s48, %s49
      %p58 = scmp.eq.s32.totalorder %s17, 0
      %p59 = por %p57, %p58
      %p60 = scmp.ne.s32.totalorder %s48, %s49
      %p61 = scmp.eq.s32.totalorder %s18, 1
      %p62 = por %p60, %p61
      %p64 = scmp.ne.s32.totalorder %s49, %s63
      %p65 = scmp.eq.s32.totalorder %s18, 0
      %p66 = por %p64, %p65
      %s68 = sadd.s32 %s67, 1
      %p71 = scmp.eq.s32.totalorder %s12, 1
      %p72 = scmp.ne.s32.totalorder %s67, %s69
      %p73 = scmp.eq.s32.totalorder %s12, 0
      %p74 = por %p72, %p73
      %p75 = scmp.ne.s32.totalorder %s67, %s69
      %p76 = scmp.eq.s32.totalorder %s17, 1
      %p77 = por %p75, %p76
      %p78 = scmp.ne.s32.totalorder %s69, %s70
      %p79 = scmp.eq.s32.totalorder %s17, 0
      %p80 = por %p78, %p79
      %p81 = scmp.ne.s32.totalorder %s69, %s70
      %p82 = scmp.eq.s32.totalorder %s18, 1
      %p83 = por %p81, %p82
      %p85 = scmp.ne.s32.totalorder %s70, %s84
      %p86 = scmp.eq.s32.totalorder %s18, 0
      %p87 = por %p85, %p86
      %s88 = ssub.s32 %s12, %s19
      %p89 = scmp.eq.s32.totalorder %s88, 0
      %s91 = sadd.s32 %s90, 1
      %s92 = scalar_select %p89, %s90, %s91
      %p95 = pneg %p89
      %p96 = scmp.eq.s32.totalorder %s12, 1
      %p97 = por %p95, %p96
      %p98 = scmp.ne.s32.totalorder %s90, %s93
      %p99 = scmp.eq.s32.totalorder %s12, 0
      %p100 = por %p98, %p99
      %p101 = scmp.ne.s32.totalorder %s90, %s93
      %p102 = scmp.eq.s32.totalorder %s17, 1
      %p103 = por %p101, %p102
      %p104 = scmp.ne.s32.totalorder %s93, %s94
      %p105 = scmp.eq.s32.totalorder %s17, 0
      %p106 = por %p104, %p105
      %p107 = scmp.ne.s32.totalorder %s93, %s94
      %p108 = scmp.eq.s32.totalorder %s18, 1
      %p109 = por %p107, %p108
      %p111 = scmp.ne.s32.totalorder %s94, %s110
      %p112 = scmp.eq.s32.totalorder %s18, 0
      %p113 = por %p111, %p112
      %p114 = scmp.le.s32.totalorder 1, %s12
      %p115 = scmp.lt.s32.totalorder %s12, 3
      %p116 = pnand %p114, %p115
      %p117 = pneg %p116
      // Predicated region
      $region9: #{tpu_custom_call.1} parent=5 // pred_check
        _
      $region10: #{tpu_custom_call.1} parent=5 // pred_check_branch
        %119 = sbr.rel (%p116) target = $region12
      $region11: #{tpu_custom_call.1} parent=5 // pred_region
        %s120 = ssub.s32 %s12, 1
        // Predicated region
        $region13: #{tpu_custom_call.1} parent=11 // pred_check
          %p121 = pneg %p59
        $region14: #{tpu_custom_call.1} parent=11 // pred_check_branch
          %123 = sbr.rel (%p121) target = $region16
        $region15: #{tpu_custom_call.1} parent=11 // pred_region
          _
        $region16: #{tpu_custom_call.1} parent=11 // pred_fallthru
          _
        // Predicated region
        $region17: #{tpu_custom_call.1} parent=11 // pred_check
          %p124 = pneg %p80
        $region18: #{tpu_custom_call.1} parent=11 // pred_check_branch
          %126 = sbr.rel (%p124) target = $region20
        $region19: #{tpu_custom_call.1} parent=11 // pred_region
          _
        $region20: #{tpu_custom_call.1} parent=11 // pred_fallthru
          _
      $region12: #{tpu_custom_call.1} parent=5 // pred_fallthru
        _
      %p127 = scmp.lt.s32.totalorder %s12, 2
      // Predicated region
      $region21: #{tpu_custom_call.1} parent=5 // pred_check
        %p128 = pneg %p127
      $region22: #{tpu_custom_call.1} parent=5 // pred_check_branch
        %130 = sbr.rel (%p128) target = $region24
      $region23: #{tpu_custom_call.1} parent=5 // pred_region
        // Predicated region
        $region25: #{tpu_custom_call.1} parent=23 // pred_check
          %p131 = pneg %p32
        $region26: #{tpu_custom_call.1} parent=23 // pred_check_branch
          %133 = sbr.rel (%p131) target = $region28
        $region27: #{tpu_custom_call.1} parent=23 // pred_region
          %p134 = scmp.lt.s32.totalorder %s12, 1
          %s135 = scalar_select %p134, %s12, 1
          %s136 = smul.addr %s135, 4
          %s137 = smul.addr %s136, 4
          %s138 = scalar_lea.vmem %s0, %s137
        $region28: #{tpu_custom_call.1} parent=23 // pred_fallthru
          _
      $region24: #{tpu_custom_call.1} parent=5 // pred_fallthru
        _
      %p139 = scmp.le.s32.totalorder 1, %s12
      %p140 = scmp.lt.s32.totalorder %s12, 3
      %p141 = pnand %p139, %p140
      %p142 = pneg %p141
      // Predicated region
      $region29: #{tpu_custom_call.1} parent=5 // pred_check
        _
      $region30: #{tpu_custom_call.1} parent=5 // pred_check_branch
        %144 = sbr.rel (%p141) target = $region32
      $region31: #{tpu_custom_call.1} parent=5 // pred_region
        %s145 = ssub.s32 %s12, 1
        %p146 = scmp.lt.s32.totalorder %s17, 1
        %s147 = scalar_select %p146, %s17, 1
        %s148 = smul.addr %s147, 4
        %s149 = smul.addr %s148, 4
        %s150 = scalar_lea.vmem %s0, %s149
        %p151 = pneg %p38
        %p152 = pneg %p35
        %p153 = pneg %p59
        %p154 = pneg %p56
        %p155 = pneg %p80
        %p156 = pneg %p77
        %p157 = pneg %p106
        %p158 = pneg %p103
        %s159 = sand.u32 %s93, 1
        %s160 = scalar_lea.sflag [#allocation3], %s159
        %s161 = sand.u32 %s93, 1
        %s162 = smul.addr %s161, 24
        %s163 = scalar_lea.vmem [#allocation2], %s162
        %p164 = scmp.lt.s32.totalorder %s17, 1
        %s165 = scalar_select %p164, %s17, 1
        %s166 = smul.addr %s165, 4
        %s167 = smul.addr %s166, 4
        %s168 = scalar_lea.vmem %s0, %s167
        %v169 = vld [vmem:[%s2] sm:$0xff]
        %v170 = vld [vmem:[%s168] sm:$0xff]
        %v171 = vld [vmem:[%s168 + $0x8] sm:$0xf]
        %v172 = vld [vmem:[%s1] sm:$0xff]
        %175 = vst [vmem:[#allocation1] ss:$2 sm:$0xff] %v170
        %s176 = scalar_lea.vmem [#allocation1], 16
        %177 = vst [vmem:[%s176] ss:$2 sm:$0xff] %v171
        %v178 = vld.sshfl [vmem:[#allocation1] sm:$0xff pattern:$0x75316420]
        %v179 = vld.sshfl [vmem:[#allocation1 + $0x8] sm:$0xff pattern:$0x75316420]
        %v180 = vld.sshfl [vmem:[#allocation1 + $0x10] sm:$0xff pattern:$0x75316420]
        %vm181 = vcmask 31744
        %v183 = vsel %vm181, %v172, 0
        %vm185 = vcmask 1043456
        %v186 = vsel %vm185, %v178, 0
        %v188 = vsel %vm185, %v179, 0
        %v190 = vsel %vm185, %v180, 0
        %192 = vmatpush.msra.mxu0 0.0
        %193 = vmatpush.msra.mxu0 0.0
        %194 = vmatpush.msra.mxu0 0.0
        %195 = vmatpush.msra.mxu0 0.0
        %196 = vmatpush.msra.mxu0 0.0
        %197 = vmatpush.msra.mxu0 0.0
        %198 = vmatpush.msra.mxu0 0.0
        %199 = vmatpush.msra.mxu0 0.0
        %200 = vmatpush.msra.mxu0 0.0
        %201 = vmatpush.msra.mxu0 0.0
        %202 = vmatpush.msra.mxu0 0.0
        %203 = vmatpush.msra.mxu0 0.0
        %204 = vmatpush.msra.mxu0 0.0
        %205 = vmatpush.msra.mxu0 0.0
        %206 = vmatpush.msra.mxu0 0.0
        %207 = vmatpush.msra.mxu0 %v186
        %208 = vmatmul.f32.gmra.mxu0 %v183
        %v209 = vpop.f32.mrf.mxu0
        %v210 = vadd.f32 0.0, %v209
        %211 = vdwg.mxu0
        %212 = vmatpush.msra.mxu0 0.0
        %213 = vmatpush.msra.mxu0 0.0
        %214 = vmatpush.msra.mxu0 0.0
        %215 = vmatpush.msra.mxu0 0.0
        %216 = vmatpush.msra.mxu0 0.0
        %217 = vmatpush.msra.mxu0 0.0
        %218 = vmatpush.msra.mxu0 0.0
        %219 = vmatpush.msra.mxu0 0.0
        %220 = vmatpush.msra.mxu0 0.0
        %221 = vmatpush.msra.mxu0 0.0
        %222 = vmatpush.msra.mxu0 0.0
        %223 = vmatpush.msra.mxu0 0.0
        %224 = vmatpush.msra.mxu0 0.0
        %225 = vmatpush.msra.mxu0 0.0
        %226 = vmatpush.msra.mxu0 0.0
        %227 = vmatpush.msra.mxu0 %v188
        %228 = vmatmul.f32.gmra.mxu0 %v183
        %v229 = vpop.f32.mrf.mxu0
        %v230 = vadd.f32 0.0, %v229
        %231 = vdwg.mxu0
        %232 = vmatpush.msra.mxu0 0.0
        %233 = vmatpush.msra.mxu0 0.0
        %234 = vmatpush.msra.mxu0 0.0
        %235 = vmatpush.msra.mxu0 0.0
        %236 = vmatpush.msra.mxu0 0.0
        %237 = vmatpush.msra.mxu0 0.0
        %238 = vmatpush.msra.mxu0 0.0
        %239 = vmatpush.msra.mxu0 0.0
        %240 = vmatpush.msra.mxu0 0.0
        %241 = vmatpush.msra.mxu0 0.0
        %242 = vmatpush.msra.mxu0 0.0
        %243 = vmatpush.msra.mxu0 0.0
        %244 = vmatpush.msra.mxu0 0.0
        %245 = vmatpush.msra.mxu0 0.0
        %246 = vmatpush.msra.mxu0 0.0
        %247 = vmatpush.msra.mxu0 %v190
        %248 = vmatmul.f32.gmra.mxu0 %v183
        %v249 = vpop.f32.mrf.mxu0
        %v250 = vadd.f32 0.0, %v249
        %251 = vdwg.mxu0
        %253 = vset.pattern.permute.xlu0 0
        %254 = vperm.xlu0 %253, %v169
        %v255 = vpop.permute.xlu0 %254
        %v257 = vadd.f32 %v255, %v210
        %v258 = vadd.f32 %v255, %v230
        %v259 = vadd.f32 %v255, %v250
        %v260 = vld [vmem:[%s168] sm:$0xff]
        %v261 = vld [vmem:[%s168 + $0x8] sm:$0xff]
        %s262 = scalar_lea.vmem %s1, 8
        %v263 = vld [vmem:[%s262] sm:$0xff]
        %266 = vst [vmem:[#allocation1] ss:$2 sm:$0xff] %v260
        %s267 = scalar_lea.vmem [#allocation1], 16
        %268 = vst [vmem:[%s267] ss:$2 sm:$0xff] %v261
        %v269 = vld.sshfl [vmem:[#allocation1] sm:$0xff pattern:$0x75316420]
        %v270 = vld.sshfl [vmem:[#allocation1 + $0x8] sm:$0xff pattern:$0x75316420]
        %v271 = vld.sshfl [vmem:[#allocation1 + $0x10] sm:$0xff pattern:$0x75316420]
        %v272 = vld.sshfl [vmem:[#allocation1 + $0x18] sm:$0xff pattern:$0x75316420]
        %273 = vrot.lane.b32.xlu0 %v269, 127
        %v274 = vpop.permute.xlu0 %273
        %275 = vrot.lane.b32.xlu0 %v270, 127
        %v276 = vpop.permute.xlu0 %275
        %277 = vrot.lane.b32.xlu0 %v271, 127
        %v278 = vpop.permute.xlu0 %277
        %279 = vrot.lane.b32.xlu0 %v272, 127
        %v280 = vpop.permute.xlu0 %279
        %vm281 = vcmask 1039360
        %v282 = vsel %vm281, %v274, %v276
        %v283 = vsel %vm281, %v276, %v278
        %v284 = vsel %vm281, %v278, %v280
        %v286 = vsel %vm181, %v263, 0
        %v288 = vsel %vm185, %v282, 0
        %v290 = vsel %vm185, %v283, 0
        %v292 = vsel %vm185, %v284, 0
        %294 = vmatpush.msra.mxu0 0.0
        %295 = vmatpush.msra.mxu0 0.0
        %296 = vmatpush.msra.mxu0 0.0
        %297 = vmatpush.msra.mxu0 0.0
        %298 = vmatpush.msra.mxu0 0.0
        %299 = vmatpush.msra.mxu0 0.0
        %300 = vmatpush.msra.mxu0 0.0
        %301 = vmatpush.msra.mxu0 0.0
        %302 = vmatpush.msra.mxu0 0.0
        %303 = vmatpush.msra.mxu0 0.0
        %304 = vmatpush.msra.mxu0 0.0
        %305 = vmatpush.msra.mxu0 0.0
        %306 = vmatpush.msra.mxu0 0.0
        %307 = vmatpush.msra.mxu0 0.0
        %308 = vmatpush.msra.mxu0 0.0
        %309 = vmatpush.msra.mxu0 %v288
        %310 = vmatmul.f32.gmra.mxu0 %v286
        %v311 = vpop.f32.mrf.mxu0
        %v312 = vadd.f32 0.0, %v311
        %313 = vdwg.mxu0
        %314 = vmatpush.msra.mxu0 0.0
        %315 = vmatpush.msra.mxu0 0.0
        %316 = vmatpush.msra.mxu0 0.0
        %317 = vmatpush.msra.mxu0 0.0
        %318 = vmatpush.msra.mxu0 0.0
        %319 = vmatpush.msra.mxu0 0.0
        %320 = vmatpush.msra.mxu0 0.0
        %321 = vmatpush.msra.mxu0 0.0
        %322 = vmatpush.msra.mxu0 0.0
        %323 = vmatpush.msra.mxu0 0.0
        %324 = vmatpush.msra.mxu0 0.0
        %325 = vmatpush.msra.mxu0 0.0
        %326 = vmatpush.msra.mxu0 0.0
        %327 = vmatpush.msra.mxu0 0.0
        %328 = vmatpush.msra.mxu0 0.0
        %329 = vmatpush.msra.mxu0 %v290
        %330 = vmatmul.f32.gmra.mxu0 %v286
        %v331 = vpop.f32.mrf.mxu0
        %v332 = vadd.f32 0.0, %v331
        %333 = vdwg.mxu0
        %334 = vmatpush.msra.mxu0 0.0
        %335 = vmatpush.msra.mxu0 0.0
        %336 = vmatpush.msra.mxu0 0.0
        %337 = vmatpush.msra.mxu0 0.0
        %338 = vmatpush.msra.mxu0 0.0
        %339 = vmatpush.msra.mxu0 0.0
        %340 = vmatpush.msra.mxu0 0.0
        %341 = vmatpush.msra.mxu0 0.0
        %342 = vmatpush.msra.mxu0 0.0
        %343 = vmatpush.msra.mxu0 0.0
        %344 = vmatpush.msra.mxu0 0.0
        %345 = vmatpush.msra.mxu0 0.0
        %346 = vmatpush.msra.mxu0 0.0
        %347 = vmatpush.msra.mxu0 0.0
        %348 = vmatpush.msra.mxu0 0.0
        %349 = vmatpush.msra.mxu0 %v292
        %350 = vmatmul.f32.gmra.mxu0 %v286
        %v351 = vpop.f32.mrf.mxu0
        %v352 = vadd.f32 0.0, %v351
        %353 = vdwg.mxu0
        %v354 = vadd.f32 %v257, %v312
        %v355 = vadd.f32 %v258, %v332
        %v356 = vadd.f32 %v259, %v352
        %v357 = vld [vmem:[%s168] sm:$0xff]
        %v358 = vld [vmem:[%s168 + $0x8] sm:$0xff]
        %s359 = scalar_lea.vmem %s1, 16
        %v360 = vld [vmem:[%s359] sm:$0xff]
        %363 = vst [vmem:[#allocation1] ss:$2 sm:$0xff] %v357
        %s364 = scalar_lea.vmem [#allocation1], 16
        %365 = vst [vmem:[%s364] ss:$2 sm:$0xff] %v358
        %v366 = vld.sshfl [vmem:[#allocation1] sm:$0xff pattern:$0x75316420]
        %v367 = vld.sshfl [vmem:[#allocation1 + $0x8] sm:$0xff pattern:$0x75316420]
        %v368 = vld.sshfl [vmem:[#allocation1 + $0x10] sm:$0xff pattern:$0x75316420]
        %v369 = vld.sshfl [vmem:[#allocation1 + $0x18] sm:$0xff pattern:$0x75316420]
        %370 = vrot.lane.b32.xlu0 %v366, 126
        %v371 = vpop.permute.xlu0 %370
        %372 = vrot.lane.b32.xlu0 %v367, 126
        %v373 = vpop.permute.xlu0 %372
        %374 = vrot.lane.b32.xlu0 %v368, 126
        %v375 = vpop.permute.xlu0 %374
        %376 = vrot.lane.b32.xlu0 %v369, 126
        %v377 = vpop.permute.xlu0 %376
        %vm378 = vcmask 1031168
        %v379 = vsel %vm378, %v371, %v373
        %v380 = vsel %vm378, %v373, %v375
        %v381 = vsel %vm378, %v375, %v377
        %v383 = vsel %vm181, %v360, 0
        %v385 = vsel %vm185, %v379, 0
        %v387 = vsel %vm185, %v380, 0
        %v389 = vsel %vm185, %v381, 0
        %391 = vmatpush.msra.mxu0 0.0
        %392 = vmatpush.msra.mxu0 0.0
        %393 = vmatpush.msra.mxu0 0.0
        %394 = vmatpush.msra.mxu0 0.0
        %395 = vmatpush.msra.mxu0 0.0
        %396 = vmatpush.msra.mxu0 0.0
        %397 = vmatpush.msra.mxu0 0.0
        %398 = vmatpush.msra.mxu0 0.0
        %399 = vmatpush.msra.mxu0 0.0
        %400 = vmatpush.msra.mxu0 0.0
        %401 = vmatpush.msra.mxu0 0.0
        %402 = vmatpush.msra.mxu0 0.0
        %403 = vmatpush.msra.mxu0 0.0
        %404 = vmatpush.msra.mxu0 0.0
        %405 = vmatpush.msra.mxu0 0.0
        %406 = vmatpush.msra.mxu0 %v385
        %407 = vmatmul.f32.gmra.mxu0 %v383
        %v408 = vpop.f32.mrf.mxu0
        %v409 = vadd.f32 0.0, %v408
        %410 = vdwg.mxu0
        %411 = vmatpush.msra.mxu0 0.0
        %412 = vmatpush.msra.mxu0 0.0
        %413 = vmatpush.msra.mxu0 0.0
        %414 = vmatpush.msra.mxu0 0.0
        %415 = vmatpush.msra.mxu0 0.0
        %416 = vmatpush.msra.mxu0 0.0
        %417 = vmatpush.msra.mxu0 0.0
        %418 = vmatpush.msra.mxu0 0.0
        %419 = vmatpush.msra.mxu0 0.0
        %420 = vmatpush.msra.mxu0 0.0
        %421 = vmatpush.msra.mxu0 0.0
        %422 = vmatpush.msra.mxu0 0.0
        %423 = vmatpush.msra.mxu0 0.0
        %424 = vmatpush.msra.mxu0 0.0
        %425 = vmatpush.msra.mxu0 0.0
        %426 = vmatpush.msra.mxu0 %v387
        %427 = vmatmul.f32.gmra.mxu0 %v383
        %v428 = vpop.f32.mrf.mxu0
        %v429 = vadd.f32 0.0, %v428
        %430 = vdwg.mxu0
        %431 = vmatpush.msra.mxu0 0.0
        %432 = vmatpush.msra.mxu0 0.0
        %433 = vmatpush.msra.mxu0 0.0
        %434 = vmatpush.msra.mxu0 0.0
        %435 = vmatpush.msra.mxu0 0.0
        %436 = vmatpush.msra.mxu0 0.0
        %437 = vmatpush.msra.mxu0 0.0
        %438 = vmatpush.msra.mxu0 0.0
        %439 = vmatpush.msra.mxu0 0.0
        %440 = vmatpush.msra.mxu0 0.0
        %441 = vmatpush.msra.mxu0 0.0
        %442 = vmatpush.msra.mxu0 0.0
        %443 = vmatpush.msra.mxu0 0.0
        %444 = vmatpush.msra.mxu0 0.0
        %445 = vmatpush.msra.mxu0 0.0
        %446 = vmatpush.msra.mxu0 %v389
        %447 = vmatmul.f32.gmra.mxu0 %v383
        %v448 = vpop.f32.mrf.mxu0
        %v449 = vadd.f32 0.0, %v448
        %450 = vdwg.mxu0
        %v451 = vadd.f32 %v354, %v409
        %v452 = vadd.f32 %v355, %v429
        %v453 = vadd.f32 %v356, %v449
        %v454 = vld [vmem:[%s168] sm:$0xff]
        %v455 = vld [vmem:[%s168 + $0x8] sm:$0xff]
        %s456 = scalar_lea.vmem %s1, 24
        %v457 = vld [vmem:[%s456] sm:$0xff]
        %460 = vst [vmem:[#allocation1] ss:$2 sm:$0xff] %v454
        %s461 = scalar_lea.vmem [#allocation1], 16
        %462 = vst [vmem:[%s461] ss:$2 sm:$0xff] %v455
        %v463 = vld.sshfl [vmem:[#allocation1] sm:$0xff pattern:$0x75316420]
        %v464 = vld.sshfl [vmem:[#allocation1 + $0x8] sm:$0xff pattern:$0x75316420]
        %v465 = vld.sshfl [vmem:[#allocation1 + $0x10] sm:$0xff pattern:$0x75316420]
        %v466 = vld.sshfl [vmem:[#allocation1 + $0x18] sm:$0xff pattern:$0x75316420]
        %467 = vrot.lane.b32.xlu0 %v463, 110
        %v468 = vpop.permute.xlu0 %467
        %469 = vrot.lane.b32.xlu0 %v464, 110
        %v470 = vpop.permute.xlu0 %469
        %471 = vrot.lane.b32.xlu0 %v465, 110
        %v472 = vpop.permute.xlu0 %471
        %473 = vrot.lane.b32.xlu0 %v466, 110
        %v474 = vpop.permute.xlu0 %473
        %vm475 = vcmask 900096
        %v476 = vsel %vm475, %v468, %v470
        %v477 = vsel %vm475, %v470, %v472
        %v478 = vsel %vm475, %v472, %v474
        %v480 = vsel %vm181, %v457, 0
        %v482 = vsel %vm185, %v476, 0
        %v484 = vsel %vm185, %v477, 0
        %v486 = vsel %vm185, %v478, 0
        %488 = vmatpush.msra.mxu0 0.0
        %489 = vmatpush.msra.mxu0 0.0
        %490 = vmatpush.msra.mxu0 0.0
        %491 = vmatpush.msra.mxu0 0.0
        %492 = vmatpush.msra.mxu0 0.0
        %493 = vmatpush.msra.mxu0 0.0
        %494 = vmatpush.msra.mxu0 0.0
        %495 = vmatpush.msra.mxu0 0.0
        %496 = vmatpush.msra.mxu0 0.0
        %497 = vmatpush.msra.mxu0 0.0
        %498 = vmatpush.msra.mxu0 0.0
        %499 = vmatpush.msra.mxu0 0.0
        %500 = vmatpush.msra.mxu0 0.0
        %501 = vmatpush.msra.mxu0 0.0
        %502 = vmatpush.msra.mxu0 0.0
        %503 = vmatpush.msra.mxu0 %v482
        %504 = vmatmul.f32.gmra.mxu0 %v480
        %v505 = vpop.f32.mrf.mxu0
        %v506 = vadd.f32 0.0, %v505
        %507 = vdwg.mxu0
        %508 = vmatpush.msra.mxu0 0.0
        %509 = vmatpush.msra.mxu0 0.0
        %510 = vmatpush.msra.mxu0 0.0
        %511 = vmatpush.msra.mxu0 0.0
        %512 = vmatpush.msra.mxu0 0.0
        %513 = vmatpush.msra.mxu0 0.0
        %514 = vmatpush.msra.mxu0 0.0
        %515 = vmatpush.msra.mxu0 0.0
        %516 = vmatpush.msra.mxu0 0.0
        %517 = vmatpush.msra.mxu0 0.0
        %518 = vmatpush.msra.mxu0 0.0
        %519 = vmatpush.msra.mxu0 0.0
        %520 = vmatpush.msra.mxu0 0.0
        %521 = vmatpush.msra.mxu0 0.0
        %522 = vmatpush.msra.mxu0 0.0
        %523 = vmatpush.msra.mxu0 %v484
        %524 = vmatmul.f32.gmra.mxu0 %v480
        %v525 = vpop.f32.mrf.mxu0
        %v526 = vadd.f32 0.0, %v525
        %527 = vdwg.mxu0
        %528 = vmatpush.msra.mxu0 0.0
        %529 = vmatpush.msra.mxu0 0.0
        %530 = vmatpush.msra.mxu0 0.0
        %531 = vmatpush.msra.mxu0 0.0
        %532 = vmatpush.msra.mxu0 0.0
        %533 = vmatpush.msra.mxu0 0.0
        %534 = vmatpush.msra.mxu0 0.0
        %535 = vmatpush.msra.mxu0 0.0
        %536 = vmatpush.msra.mxu0 0.0
        %537 = vmatpush.msra.mxu0 0.0
        %538 = vmatpush.msra.mxu0 0.0
        %539 = vmatpush.msra.mxu0 0.0
        %540 = vmatpush.msra.mxu0 0.0
        %541 = vmatpush.msra.mxu0 0.0
        %542 = vmatpush.msra.mxu0 0.0
        %543 = vmatpush.msra.mxu0 %v486
        %544 = vmatmul.f32.gmra.mxu0 %v480
        %v545 = vpop.f32.mrf.mxu0
        %v546 = vadd.f32 0.0, %v545
        %547 = vdwg.mxu0
        %v548 = vadd.f32 %v451, %v506
        %v549 = vadd.f32 %v452, %v526
        %v550 = vadd.f32 %v453, %v546
        %v551 = vld [vmem:[%s168] sm:$0xff]
        %v552 = vld [vmem:[%s168 + $0x8] sm:$0xff]
        %s553 = scalar_lea.vmem %s1, 32
        %v554 = vld [vmem:[%s553] sm:$0xff]
        %557 = vst [vmem:[#allocation1] ss:$2 sm:$0xff] %v551
        %s558 = scalar_lea.vmem [#allocation1], 16
        %559 = vst [vmem:[%s558] ss:$2 sm:$0xff] %v552
        %v560 = vld.sshfl [vmem:[#allocation1] sm:$0xff pattern:$0x75316420]
        %v561 = vld.sshfl [vmem:[#allocation1 + $0x8] sm:$0xff pattern:$0x75316420]
        %v562 = vld.sshfl [vmem:[#allocation1 + $0x10] sm:$0xff pattern:$0x75316420]
        %v563 = vld.sshfl [vmem:[#allocation1 + $0x18] sm:$0xff pattern:$0x75316420]
        %564 = vrot.lane.b32.xlu0 %v560, 109
        %v565 = vpop.permute.xlu0 %564
        %566 = vrot.lane.b32.xlu0 %v561, 109
        %v567 = vpop.permute.xlu0 %566
        %568 = vrot.lane.b32.xlu0 %v562, 109
        %v569 = vpop.permute.xlu0 %568
        %570 = vrot.lane.b32.xlu0 %v563, 109
        %v571 = vpop.permute.xlu0 %570
        %vm572 = vcmask 891904
        %v573 = vsel %vm572, %v565, %v567
        %v574 = vsel %vm572, %v567, %v569
        %v575 = vsel %vm572, %v569, %v571
        %v577 = vsel %vm181, %v554, 0
        %v579 = vsel %vm185, %v573, 0
        %v581 = vsel %vm185, %v574, 0
        %v583 = vsel %vm185, %v575, 0
        %585 = vmatpush.msra.mxu0 0.0
        %586 = vmatpush.msra.mxu0 0.0
        %587 = vmatpush.msra.mxu0 0.0
        %588 = vmatpush.msra.mxu0 0.0
        %589 = vmatpush.msra.mxu0 0.0
        %590 = vmatpush.msra.mxu0 0.0
        %591 = vmatpush.msra.mxu0 0.0
        %592 = vmatpush.msra.mxu0 0.0
        %593 = vmatpush.msra.mxu0 0.0
        %594 = vmatpush.msra.mxu0 0.0
        %595 = vmatpush.msra.mxu0 0.0
        %596 = vmatpush.msra.mxu0 0.0
        %597 = vmatpush.msra.mxu0 0.0
        %598 = vmatpush.msra.mxu0 0.0
        %599 = vmatpush.msra.mxu0 0.0
        %600 = vmatpush.msra.mxu0 %v579
        %601 = vmatmul.f32.gmra.mxu0 %v577
        %v602 = vpop.f32.mrf.mxu0
        %v603 = vadd.f32 0.0, %v602
        %604 = vdwg.mxu0
        %605 = vmatpush.msra.mxu0 0.0
        %606 = vmatpush.msra.mxu0 0.0
        %607 = vmatpush.msra.mxu0 0.0
        %608 = vmatpush.msra.mxu0 0.0
        %609 = vmatpush.msra.mxu0 0.0
        %610 = vmatpush.msra.mxu0 0.0
        %611 = vmatpush.msra.mxu0 0.0
        %612 = vmatpush.msra.mxu0 0.0
        %613 = vmatpush.msra.mxu0 0.0
        %614 = vmatpush.msra.mxu0 0.0
        %615 = vmatpush.msra.mxu0 0.0
        %616 = vmatpush.msra.mxu0 0.0
        %617 = vmatpush.msra.mxu0 0.0
        %618 = vmatpush.msra.mxu0 0.0
        %619 = vmatpush.msra.mxu0 0.0
        %620 = vmatpush.msra.mxu0 %v581
        %621 = vmatmul.f32.gmra.mxu0 %v577
        %v622 = vpop.f32.mrf.mxu0
        %v623 = vadd.f32 0.0, %v622
        %624 = vdwg.mxu0
        %625 = vmatpush.msra.mxu0 0.0
        %626 = vmatpush.msra.mxu0 0.0
        %627 = vmatpush.msra.mxu0 0.0
        %628 = vmatpush.msra.mxu0 0.0
        %629 = vmatpush.msra.mxu0 0.0
        %630 = vmatpush.msra.mxu0 0.0
        %631 = vmatpush.msra.mxu0 0.0
        %632 = vmatpush.msra.mxu0 0.0
        %633 = vmatpush.msra.mxu0 0.0
        %634 = vmatpush.msra.mxu0 0.0
        %635 = vmatpush.msra.mxu0 0.0
        %636 = vmatpush.msra.mxu0 0.0
        %637 = vmatpush.msra.mxu0 0.0
        %638 = vmatpush.msra.mxu0 0.0
        %639 = vmatpush.msra.mxu0 0.0
        %640 = vmatpush.msra.mxu0 %v583
        %641 = vmatmul.f32.gmra.mxu0 %v577
        %v642 = vpop.f32.mrf.mxu0
        %v643 = vadd.f32 0.0, %v642
        %644 = vdwg.mxu0
        %v645 = vadd.f32 %v548, %v603
        %v646 = vadd.f32 %v549, %v623
        %v647 = vadd.f32 %v550, %v643
        %v648 = vld [vmem:[%s168] sm:$0xff]
        %v649 = vld [vmem:[%s168 + $0x8] sm:$0xff]
        %s650 = scalar_lea.vmem %s1, 40
        %v651 = vld [vmem:[%s650] sm:$0xff]
        %654 = vst [vmem:[#allocation1] ss:$2 sm:$0xff] %v648
        %s655 = scalar_lea.vmem [#allocation1], 16
        %656 = vst [vmem:[%s655] ss:$2 sm:$0xff] %v649
        %v657 = vld.sshfl [vmem:[#allocation1] sm:$0xff pattern:$0x75316420]
        %v658 = vld.sshfl [vmem:[#allocation1 + $0x8] sm:$0xff pattern:$0x75316420]
        %v659 = vld.sshfl [vmem:[#allocation1 + $0x10] sm:$0xff pattern:$0x75316420]
        %v660 = vld.sshfl [vmem:[#allocation1 + $0x18] sm:$0xff pattern:$0x75316420]
        %661 = vrot.lane.b32.xlu0 %v657, 108
        %v662 = vpop.permute.xlu0 %661
        %663 = vrot.lane.b32.xlu0 %v658, 108
        %v664 = vpop.permute.xlu0 %663
        %665 = vrot.lane.b32.xlu0 %v659, 108
        %v666 = vpop.permute.xlu0 %665
        %667 = vrot.lane.b32.xlu0 %v660, 108
        %v668 = vpop.permute.xlu0 %667
        %vm669 = vcmask 883712
        %v670 = vsel %vm669, %v662, %v664
        %v671 = vsel %vm669, %v664, %v666
        %v672 = vsel %vm669, %v666, %v668
        %v674 = vsel %vm181, %v651, 0
        %v676 = vsel %vm185, %v670, 0
        %v678 = vsel %vm185, %v671, 0
        %v680 = vsel %vm185, %v672, 0
        %682 = vmatpush.msra.mxu0 0.0
        %683 = vmatpush.msra.mxu0 0.0
        %684 = vmatpush.msra.mxu0 0.0
        %685 = vmatpush.msra.mxu0 0.0
        %686 = vmatpush.msra.mxu0 0.0
        %687 = vmatpush.msra.mxu0 0.0
        %688 = vmatpush.msra.mxu0 0.0
        %689 = vmatpush.msra.mxu0 0.0
        %690 = vmatpush.msra.mxu0 0.0
        %691 = vmatpush.msra.mxu0 0.0
        %692 = vmatpush.msra.mxu0 0.0
        %693 = vmatpush.msra.mxu0 0.0
        %694 = vmatpush.msra.mxu0 0.0
        %695 = vmatpush.msra.mxu0 0.0
        %696 = vmatpush.msra.mxu0 0.0
        %697 = vmatpush.msra.mxu0 %v676
        %698 = vmatmul.f32.gmra.mxu0 %v674
        %v699 = vpop.f32.mrf.mxu0
        %v700 = vadd.f32 0.0, %v699
        %701 = vdwg.mxu0
        %702 = vmatpush.msra.mxu0 0.0
        %703 = vmatpush.msra.mxu0 0.0
        %704 = vmatpush.msra.mxu0 0.0
        %705 = vmatpush.msra.mxu0 0.0
        %706 = vmatpush.msra.mxu0 0.0
        %707 = vmatpush.msra.mxu0 0.0
        %708 = vmatpush.msra.mxu0 0.0
        %709 = vmatpush.msra.mxu0 0.0
        %710 = vmatpush.msra.mxu0 0.0
        %711 = vmatpush.msra.mxu0 0.0
        %712 = vmatpush.msra.mxu0 0.0
        %713 = vmatpush.msra.mxu0 0.0
        %714 = vmatpush.msra.mxu0 0.0
        %715 = vmatpush.msra.mxu0 0.0
        %716 = vmatpush.msra.mxu0 0.0
        %717 = vmatpush.msra.mxu0 %v678
        %718 = vmatmul.f32.gmra.mxu0 %v674
        %v719 = vpop.f32.mrf.mxu0
        %v720 = vadd.f32 0.0, %v719
        %721 = vdwg.mxu0
        %722 = vmatpush.msra.mxu0 0.0
        %723 = vmatpush.msra.mxu0 0.0
        %724 = vmatpush.msra.mxu0 0.0
        %725 = vmatpush.msra.mxu0 0.0
        %726 = vmatpush.msra.mxu0 0.0
        %727 = vmatpush.msra.mxu0 0.0
        %728 = vmatpush.msra.mxu0 0.0
        %729 = vmatpush.msra.mxu0 0.0
        %730 = vmatpush.msra.mxu0 0.0
        %731 = vmatpush.msra.mxu0 0.0
        %732 = vmatpush.msra.mxu0 0.0
        %733 = vmatpush.msra.mxu0 0.0
        %734 = vmatpush.msra.mxu0 0.0
        %735 = vmatpush.msra.mxu0 0.0
        %736 = vmatpush.msra.mxu0 0.0
        %737 = vmatpush.msra.mxu0 %v680
        %738 = vmatmul.f32.gmra.mxu0 %v674
        %v739 = vpop.f32.mrf.mxu0
        %v740 = vadd.f32 0.0, %v739
        %741 = vdwg.mxu0
        %v742 = vadd.f32 %v645, %v700
        %v743 = vadd.f32 %v646, %v720
        %v744 = vadd.f32 %v647, %v740
        %v745 = vld [vmem:[%s168] sm:$0xff]
        %v746 = vld [vmem:[%s168 + $0x8] sm:$0xff]
        %s747 = scalar_lea.vmem %s1, 48
        %v748 = vld [vmem:[%s747] sm:$0xff]
        %751 = vst [vmem:[#allocation1] ss:$2 sm:$0xff] %v745
        %s752 = scalar_lea.vmem [#allocation1], 16
        %753 = vst [vmem:[%s752] ss:$2 sm:$0xff] %v746
        %v754 = vld.sshfl [vmem:[#allocation1] sm:$0xff pattern:$0x75316420]
        %v755 = vld.sshfl [vmem:[#allocation1 + $0x8] sm:$0xff pattern:$0x75316420]
        %v756 = vld.sshfl [vmem:[#allocation1 + $0x10] sm:$0xff pattern:$0x75316420]
        %v757 = vld.sshfl [vmem:[#allocation1 + $0x18] sm:$0xff pattern:$0x75316420]
        %758 = vrot.lane.b32.xlu0 %v754, 92
        %v759 = vpop.permute.xlu0 %758
        %760 = vrot.lane.b32.xlu0 %v755, 92
        %v761 = vpop.permute.xlu0 %760
        %762 = vrot.lane.b32.xlu0 %v756, 92
        %v763 = vpop.permute.xlu0 %762
        %764 = vrot.lane.b32.xlu0 %v757, 92
        %v765 = vpop.permute.xlu0 %764
        %vm766 = vcmask 752640
        %v767 = vsel %vm766, %v759, %v761
        %v768 = vsel %vm766, %v761, %v763
        %v769 = vsel %vm766, %v763, %v765
        %v771 = vsel %vm181, %v748, 0
        %v773 = vsel %vm185, %v767, 0
        %v775 = vsel %vm185, %v768, 0
        %v777 = vsel %vm185, %v769, 0
        %779 = vmatpush.msra.mxu0 0.0
        %780 = vmatpush.msra.mxu0 0.0
        %781 = vmatpush.msra.mxu0 0.0
        %782 = vmatpush.msra.mxu0 0.0
        %783 = vmatpush.msra.mxu0 0.0
        %784 = vmatpush.msra.mxu0 0.0
        %785 = vmatpush.msra.mxu0 0.0
        %786 = vmatpush.msra.mxu0 0.0
        %787 = vmatpush.msra.mxu0 0.0
        %788 = vmatpush.msra.mxu0 0.0
        %789 = vmatpush.msra.mxu0 0.0
        %790 = vmatpush.msra.mxu0 0.0
        %791 = vmatpush.msra.mxu0 0.0
        %792 = vmatpush.msra.mxu0 0.0
        %793 = vmatpush.msra.mxu0 0.0
        %794 = vmatpush.msra.mxu0 %v773
        %795 = vmatmul.f32.gmra.mxu0 %v771
        %v796 = vpop.f32.mrf.mxu0
        %v797 = vadd.f32 0.0, %v796
        %798 = vdwg.mxu0
        %799 = vmatpush.msra.mxu0 0.0
        %800 = vmatpush.msra.mxu0 0.0
        %801 = vmatpush.msra.mxu0 0.0
        %802 = vmatpush.msra.mxu0 0.0
        %803 = vmatpush.msra.mxu0 0.0
        %804 = vmatpush.msra.mxu0 0.0
        %805 = vmatpush.msra.mxu0 0.0
        %806 = vmatpush.msra.mxu0 0.0
        %807 = vmatpush.msra.mxu0 0.0
        %808 = vmatpush.msra.mxu0 0.0
        %809 = vmatpush.msra.mxu0 0.0
        %810 = vmatpush.msra.mxu0 0.0
        %811 = vmatpush.msra.mxu0 0.0
        %812 = vmatpush.msra.mxu0 0.0
        %813 = vmatpush.msra.mxu0 0.0
        %814 = vmatpush.msra.mxu0 %v775
        %815 = vmatmul.f32.gmra.mxu0 %v771
        %v816 = vpop.f32.mrf.mxu0
        %v817 = vadd.f32 0.0, %v816
        %818 = vdwg.mxu0
        %819 = vmatpush.msra.mxu0 0.0
        %820 = vmatpush.msra.mxu0 0.0
        %821 = vmatpush.msra.mxu0 0.0
        %822 = vmatpush.msra.mxu0 0.0
        %823 = vmatpush.msra.mxu0 0.0
        %824 = vmatpush.msra.mxu0 0.0
        %825 = vmatpush.msra.mxu0 0.0
        %826 = vmatpush.msra.mxu0 0.0
        %827 = vmatpush.msra.mxu0 0.0
        %828 = vmatpush.msra.mxu0 0.0
        %829 = vmatpush.msra.mxu0 0.0
        %830 = vmatpush.msra.mxu0 0.0
        %831 = vmatpush.msra.mxu0 0.0
        %832 = vmatpush.msra.mxu0 0.0
        %833 = vmatpush.msra.mxu0 0.0
        %834 = vmatpush.msra.mxu0 %v777
        %835 = vmatmul.f32.gmra.mxu0 %v771
        %v836 = vpop.f32.mrf.mxu0
        %v837 = vadd.f32 0.0, %v836
        %838 = vdwg.mxu0
        %v839 = vadd.f32 %v742, %v797
        %v840 = vadd.f32 %v743, %v817
        %v841 = vadd.f32 %v744, %v837
        %v842 = vld [vmem:[%s168] sm:$0xff]
        %v843 = vld [vmem:[%s168 + $0x8] sm:$0xff]
        %s844 = scalar_lea.vmem %s1, 56
        %v845 = vld [vmem:[%s844] sm:$0xff]
        %848 = vst [vmem:[#allocation1] ss:$2 sm:$0xff] %v842
        %s849 = scalar_lea.vmem [#allocation1], 16
        %850 = vst [vmem:[%s849] ss:$2 sm:$0xff] %v843
        %v851 = vld.sshfl [vmem:[#allocation1] sm:$0xff pattern:$0x75316420]
        %v852 = vld.sshfl [vmem:[#allocation1 + $0x8] sm:$0xff pattern:$0x75316420]
        %v853 = vld.sshfl [vmem:[#allocation1 + $0x10] sm:$0xff pattern:$0x75316420]
        %v854 = vld.sshfl [vmem:[#allocation1 + $0x18] sm:$0xff pattern:$0x75316420]
        %855 = vrot.lane.b32.xlu0 %v851, 91
        %v856 = vpop.permute.xlu0 %855
        %857 = vrot.lane.b32.xlu0 %v852, 91
        %v858 = vpop.permute.xlu0 %857
        %859 = vrot.lane.b32.xlu0 %v853, 91
        %v860 = vpop.permute.xlu0 %859
        %861 = vrot.lane.b32.xlu0 %v854, 91
        %v862 = vpop.permute.xlu0 %861
        %vm863 = vcmask 744448
        %v864 = vsel %vm863, %v856, %v858
        %v865 = vsel %vm863, %v858, %v860
        %v866 = vsel %vm863, %v860, %v862
        %v868 = vsel %vm181, %v845, 0
        %v870 = vsel %vm185, %v864, 0
        %v872 = vsel %vm185, %v865, 0
        %v874 = vsel %vm185, %v866, 0
        %876 = vmatpush.msra.mxu0 0.0
        %877 = vmatpush.msra.mxu0 0.0
        %878 = vmatpush.msra.mxu0 0.0
        %879 = vmatpush.msra.mxu0 0.0
        %880 = vmatpush.msra.mxu0 0.0
        %881 = vmatpush.msra.mxu0 0.0
        %882 = vmatpush.msra.mxu0 0.0
        %883 = vmatpush.msra.mxu0 0.0
        %884 = vmatpush.msra.mxu0 0.0
        %885 = vmatpush.msra.mxu0 0.0
        %886 = vmatpush.msra.mxu0 0.0
        %887 = vmatpush.msra.mxu0 0.0
        %888 = vmatpush.msra.mxu0 0.0
        %889 = vmatpush.msra.mxu0 0.0
        %890 = vmatpush.msra.mxu0 0.0
        %891 = vmatpush.msra.mxu0 %v870
        %892 = vmatmul.f32.gmra.mxu0 %v868
        %v893 = vpop.f32.mrf.mxu0
        %v894 = vadd.f32 0.0, %v893
        %895 = vdwg.mxu0
        %896 = vmatpush.msra.mxu0 0.0
        %897 = vmatpush.msra.mxu0 0.0
        %898 = vmatpush.msra.mxu0 0.0
        %899 = vmatpush.msra.mxu0 0.0
        %900 = vmatpush.msra.mxu0 0.0
        %901 = vmatpush.msra.mxu0 0.0
        %902 = vmatpush.msra.mxu0 0.0
        %903 = vmatpush.msra.mxu0 0.0
        %904 = vmatpush.msra.mxu0 0.0
        %905 = vmatpush.msra.mxu0 0.0
        %906 = vmatpush.msra.mxu0 0.0
        %907 = vmatpush.msra.mxu0 0.0
        %908 = vmatpush.msra.mxu0 0.0
        %909 = vmatpush.msra.mxu0 0.0
        %910 = vmatpush.msra.mxu0 0.0
        %911 = vmatpush.msra.mxu0 %v872
        %912 = vmatmul.f32.gmra.mxu0 %v868
        %v913 = vpop.f32.mrf.mxu0
        %v914 = vadd.f32 0.0, %v913
        %915 = vdwg.mxu0
        %916 = vmatpush.msra.mxu0 0.0
        %917 = vmatpush.msra.mxu0 0.0
        %918 = vmatpush.msra.mxu0 0.0
        %919 = vmatpush.msra.mxu0 0.0
        %920 = vmatpush.msra.mxu0 0.0
        %921 = vmatpush.msra.mxu0 0.0
        %922 = vmatpush.msra.mxu0 0.0
        %923 = vmatpush.msra.mxu0 0.0
        %924 = vmatpush.msra.mxu0 0.0
        %925 = vmatpush.msra.mxu0 0.0
        %926 = vmatpush.msra.mxu0 0.0
        %927 = vmatpush.msra.mxu0 0.0
        %928 = vmatpush.msra.mxu0 0.0
        %929 = vmatpush.msra.mxu0 0.0
        %930 = vmatpush.msra.mxu0 0.0
        %931 = vmatpush.msra.mxu0 %v874
        %932 = vmatmul.f32.gmra.mxu0 %v868
        %v933 = vpop.f32.mrf.mxu0
        %v934 = vadd.f32 0.0, %v933
        %935 = vdwg.mxu0
        %v936 = vadd.f32 %v839, %v894
        %v937 = vadd.f32 %v840, %v914
        %v938 = vadd.f32 %v841, %v934
        %v939 = vld [vmem:[%s168] sm:$0xff]
        %v940 = vld [vmem:[%s168 + $0x8] sm:$0xff]
        %s941 = scalar_lea.vmem %s1, 64
        %v942 = vld [vmem:[%s941] sm:$0xff]
        %945 = vst [vmem:[#allocation1] ss:$2 sm:$0xff] %v939
        %s946 = scalar_lea.vmem [#allocation1], 16
        %947 = vst [vmem:[%s946] ss:$2 sm:$0xff] %v940
        %v948 = vld.sshfl [vmem:[#allocation1] sm:$0xff pattern:$0x75316420]
        %v949 = vld.sshfl [vmem:[#allocation1 + $0x8] sm:$0xff pattern:$0x75316420]
        %v950 = vld.sshfl [vmem:[#allocation1 + $0x10] sm:$0xff pattern:$0x75316420]
        %v951 = vld.sshfl [vmem:[#allocation1 + $0x18] sm:$0xff pattern:$0x75316420]
        %952 = vrot.lane.b32.xlu0 %v948, 90
        %v953 = vpop.permute.xlu0 %952
        %954 = vrot.lane.b32.xlu0 %v949, 90
        %v955 = vpop.permute.xlu0 %954
        %956 = vrot.lane.b32.xlu0 %v950, 90
        %v957 = vpop.permute.xlu0 %956
        %958 = vrot.lane.b32.xlu0 %v951, 90
        %v959 = vpop.permute.xlu0 %958
        %vm960 = vcmask 736256
        %v961 = vsel %vm960, %v953, %v955
        %v962 = vsel %vm960, %v955, %v957
        %v963 = vsel %vm960, %v957, %v959
        %v965 = vsel %vm181, %v942, 0
        %v967 = vsel %vm185, %v961, 0
        %v969 = vsel %vm185, %v962, 0
        %v971 = vsel %vm185, %v963, 0
        %973 = vmatpush.msra.mxu0 0.0
        %974 = vmatpush.msra.mxu0 0.0
        %975 = vmatpush.msra.mxu0 0.0
        %976 = vmatpush.msra.mxu0 0.0
        %977 = vmatpush.msra.mxu0 0.0
        %978 = vmatpush.msra.mxu0 0.0
        %979 = vmatpush.msra.mxu0 0.0
        %980 = vmatpush.msra.mxu0 0.0
        %981 = vmatpush.msra.mxu0 0.0
        %982 = vmatpush.msra.mxu0 0.0
        %983 = vmatpush.msra.mxu0 0.0
        %984 = vmatpush.msra.mxu0 0.0
        %985 = vmatpush.msra.mxu0 0.0
        %986 = vmatpush.msra.mxu0 0.0
        %987 = vmatpush.msra.mxu0 0.0
        %988 = vmatpush.msra.mxu0 %v967
        %989 = vmatmul.f32.gmra.mxu0 %v965
        %v990 = vpop.f32.mrf.mxu0
        %v991 = vadd.f32 0.0, %v990
        %992 = vdwg.mxu0
        %993 = vmatpush.msra.mxu0 0.0
        %994 = vmatpush.msra.mxu0 0.0
        %995 = vmatpush.msra.mxu0 0.0
        %996 = vmatpush.msra.mxu0 0.0
        %997 = vmatpush.msra.mxu0 0.0
        %998 = vmatpush.msra.mxu0 0.0
        %999 = vmatpush.msra.mxu0 0.0
        %1000 = vmatpush.msra.mxu0 0.0
        %1001 = vmatpush.msra.mxu0 0.0
        %1002 = vmatpush.msra.mxu0 0.0
        %1003 = vmatpush.msra.mxu0 0.0
        %1004 = vmatpush.msra.mxu0 0.0
        %1005 = vmatpush.msra.mxu0 0.0
        %1006 = vmatpush.msra.mxu0 0.0
        %1007 = vmatpush.msra.mxu0 0.0
        %1008 = vmatpush.msra.mxu0 %v969
        %1009 = vmatmul.f32.gmra.mxu0 %v965
        %v1010 = vpop.f32.mrf.mxu0
        %v1011 = vadd.f32 0.0, %v1010
        %1012 = vdwg.mxu0
        %1013 = vmatpush.msra.mxu0 0.0
        %1014 = vmatpush.msra.mxu0 0.0
        %1015 = vmatpush.msra.mxu0 0.0
        %1016 = vmatpush.msra.mxu0 0.0
        %1017 = vmatpush.msra.mxu0 0.0
        %1018 = vmatpush.msra.mxu0 0.0
        %1019 = vmatpush.msra.mxu0 0.0
        %1020 = vmatpush.msra.mxu0 0.0
        %1021 = vmatpush.msra.mxu0 0.0
        %1022 = vmatpush.msra.mxu0 0.0
        %1023 = vmatpush.msra.mxu0 0.0
        %1024 = vmatpush.msra.mxu0 0.0
        %1025 = vmatpush.msra.mxu0 0.0
        %1026 = vmatpush.msra.mxu0 0.0
        %1027 = vmatpush.msra.mxu0 0.0
        %1028 = vmatpush.msra.mxu0 %v971
        %1029 = vmatmul.f32.gmra.mxu0 %v965
        %v1030 = vpop.f32.mrf.mxu0
        %v1031 = vadd.f32 0.0, %v1030
        %1032 = vdwg.mxu0
        %v1033 = vadd.f32 %v936, %v991
        %v1034 = vadd.f32 %v937, %v1011
        %v1035 = vadd.f32 %v938, %v1031
        %v1036 = vadd.f32 %v1033, 0.0
        %v1037 = vadd.f32 %v1034, 0.0
        %v1038 = vadd.f32 %v1035, 0.0
        %vm1039 = vcmp.ge.f32.partialorder %v1036, 1.0
        %vm1040 = vcmp.ge.f32.partialorder %v1037, 1.0
        %vm1041 = vcmp.ge.f32.partialorder %v1038, 1.0
        %v1042 = vsel %vm1039, 1.0, 0.0
        %v1043 = vsel %vm1040, 1.0, 0.0
        %v1044 = vsel %vm1041, 1.0, 0.0
        %v1045 = vsub.f32 %v1036, %v1042
        %v1046 = vsub.f32 %v1037, %v1043
        %v1047 = vsub.f32 %v1038, %v1044
        %v1048 = vadd.f32 %v1042, 0.0
        %v1049 = vadd.f32 %v1043, 0.0
        %v1050 = vadd.f32 %v1044, 0.0
        %v1051 = vadd.f32 %v1045, %v1033
        %v1052 = vadd.f32 %v1046, %v1034
        %v1053 = vadd.f32 %v1047, %v1035
        %vm1054 = vcmp.ge.f32.partialorder %v1051, 1.0
        %vm1055 = vcmp.ge.f32.partialorder %v1052, 1.0
        %vm1056 = vcmp.ge.f32.partialorder %v1053, 1.0
        %v1057 = vsel %vm1054, 1.0, 0.0
        %v1058 = vsel %vm1055, 1.0, 0.0
        %v1059 = vsel %vm1056, 1.0, 0.0
        %v1060 = vsub.f32 %v1051, %v1057
        %v1061 = vsub.f32 %v1052, %v1058
        %v1062 = vsub.f32 %v1053, %v1059
        %v1063 = vadd.f32 %v1048, %v1057
        %v1064 = vadd.f32 %v1049, %v1058
        %v1065 = vadd.f32 %v1050, %v1059
        %v1066 = vadd.f32 %v1060, %v1033
        %v1067 = vadd.f32 %v1061, %v1034
        %v1068 = vadd.f32 %v1062, %v1035
        %vm1069 = vcmp.ge.f32.partialorder %v1066, 1.0
        %vm1070 = vcmp.ge.f32.partialorder %v1067, 1.0
        %vm1071 = vcmp.ge.f32.partialorder %v1068, 1.0
        %v1072 = vsel %vm1069, 1.0, 0.0
        %v1073 = vsel %vm1070, 1.0, 0.0
        %v1074 = vsel %vm1071, 1.0, 0.0
        %v1075 = vsub.f32 %v1066, %v1072
        %v1076 = vsub.f32 %v1067, %v1073
        %v1077 = vsub.f32 %v1068, %v1074
        %v1078 = vadd.f32 %v1063, %v1072
        %v1079 = vadd.f32 %v1064, %v1073
        %v1080 = vadd.f32 %v1065, %v1074
        %v1081 = vadd.f32 %v1075, %v1033
        %v1082 = vadd.f32 %v1076, %v1034
        %v1083 = vadd.f32 %v1077, %v1035
        %vm1084 = vcmp.ge.f32.partialorder %v1081, 1.0
        %vm1085 = vcmp.ge.f32.partialorder %v1082, 1.0
        %vm1086 = vcmp.ge.f32.partialorder %v1083, 1.0
        %v1087 = vsel %vm1084, 1.0, 0.0
        %v1088 = vsel %vm1085, 1.0, 0.0
        %v1089 = vsel %vm1086, 1.0, 0.0
        %v1090 = vsub.f32 %v1081, %v1087
        %v1091 = vsub.f32 %v1082, %v1088
        %v1092 = vsub.f32 %v1083, %v1089
        %v1093 = vadd.f32 %v1078, %v1087
        %v1094 = vadd.f32 %v1079, %v1088
        %v1095 = vadd.f32 %v1080, %v1089
        %v1096 = vadd.f32 %v1090, %v1033
        %v1097 = vadd.f32 %v1091, %v1034
        %v1098 = vadd.f32 %v1092, %v1035
        %vm1099 = vcmp.ge.f32.partialorder %v1096, 1.0
        %vm1100 = vcmp.ge.f32.partialorder %v1097, 1.0
        %vm1101 = vcmp.ge.f32.partialorder %v1098, 1.0
        %v1102 = vsel %vm1099, 1.0, 0.0
        %v1103 = vsel %vm1100, 1.0, 0.0
        %v1104 = vsel %vm1101, 1.0, 0.0
        %v1105 = vsub.f32 %v1096, %v1102
        %v1106 = vsub.f32 %v1097, %v1103
        %v1107 = vsub.f32 %v1098, %v1104
        %v1108 = vadd.f32 %v1093, %v1102
        %v1109 = vadd.f32 %v1094, %v1103
        %v1110 = vadd.f32 %v1095, %v1104
        %v1111 = vadd.f32 %v1105, %v1033
        %v1112 = vadd.f32 %v1106, %v1034
        %v1113 = vadd.f32 %v1107, %v1035
        %vm1114 = vcmp.ge.f32.partialorder %v1111, 1.0
        %vm1115 = vcmp.ge.f32.partialorder %v1112, 1.0
        %vm1116 = vcmp.ge.f32.partialorder %v1113, 1.0
        %v1117 = vsel %vm1114, 1.0, 0.0
        %v1118 = vsel %vm1115, 1.0, 0.0
        %v1119 = vsel %vm1116, 1.0, 0.0
        %v1120 = vsub.f32 %v1111, %v1117
        %v1121 = vsub.f32 %v1112, %v1118
        %v1122 = vsub.f32 %v1113, %v1119
        %v1123 = vadd.f32 %v1108, %v1117
        %v1124 = vadd.f32 %v1109, %v1118
        %v1125 = vadd.f32 %v1110, %v1119
        %v1126 = vadd.f32 %v1120, %v1033
        %v1127 = vadd.f32 %v1121, %v1034
        %v1128 = vadd.f32 %v1122, %v1035
        %vm1129 = vcmp.ge.f32.partialorder %v1126, 1.0
        %vm1130 = vcmp.ge.f32.partialorder %v1127, 1.0
        %vm1131 = vcmp.ge.f32.partialorder %v1128, 1.0
        %v1132 = vsel %vm1129, 1.0, 0.0
        %v1133 = vsel %vm1130, 1.0, 0.0
        %v1134 = vsel %vm1131, 1.0, 0.0
        %v1135 = vsub.f32 %v1126, %v1132
        %v1136 = vsub.f32 %v1127, %v1133
        %v1137 = vsub.f32 %v1128, %v1134
        %v1138 = vadd.f32 %v1123, %v1132
        %v1139 = vadd.f32 %v1124, %v1133
        %v1140 = vadd.f32 %v1125, %v1134
        %v1141 = vadd.f32 %v1135, %v1033
        %v1142 = vadd.f32 %v1136, %v1034
        %v1143 = vadd.f32 %v1137, %v1035
        %vm1144 = vcmp.ge.f32.partialorder %v1141, 1.0
        %vm1145 = vcmp.ge.f32.partialorder %v1142, 1.0
        %vm1146 = vcmp.ge.f32.partialorder %v1143, 1.0
        %v1147 = vsel %vm1144, 1.0, 0.0
        %v1148 = vsel %vm1145, 1.0, 0.0
        %v1149 = vsel %vm1146, 1.0, 0.0
        %v1150 = vadd.f32 %v1138, %v1147
        %v1151 = vadd.f32 %v1139, %v1148
        %v1152 = vadd.f32 %v1140, %v1149
        %1153 = vst [vmem:[%s163] sm:$0xff] %v1150
        %1154 = vst [vmem:[%s163 + $0x8] sm:$0xff] %v1151
        %1155 = vst [vmem:[%s163 + $0x10] sm:$0xff] %v1152
        %s1156 = sand.u32 %s93, 1
        %s1157 = scalar_lea.sflag [#allocation3], %s1156
        %s1158 = sand.u32 %s93, 1
        %s1159 = smul.addr %s1158, 24
        %s1160 = scalar_lea.vmem [#allocation2], %s1159
        // Predicated region
        $region33: #{tpu_custom_call.1} parent=31 // pred_check
          %p1161 = pneg %p103
        $region34: #{tpu_custom_call.1} parent=31 // pred_check_branch
          %1163 = sbr.rel (%p1161) target = $region36
        $region35: #{tpu_custom_call.1} parent=31 // pred_region
          %1165 = vsyncadd %s1157, 0
          %s1166 = smul.addr %s17, 3
          %s1167 = smul.addr %s1166, 8
          %s1168 = scalar_lea.hbm %s3, %s1167
          %s1170 = sshll.u32 %s1160, 4
          %s1171 = int_to_ptr.vmem [resolvable:$true] %s1170
          %s1172 = sshll.u32 %s1168, 4
          %s1173 = int_to_ptr.hbm [resolvable:$true] %s1172
          %1175 = dma.vmem_to_hbm [thread:$0]  %s1171, 384, %s1173, %s1157
        $region36: #{tpu_custom_call.1} parent=31 // pred_fallthru
          _
      $region32: #{tpu_custom_call.1} parent=5 // pred_fallthru
        _
      %p1176 = scmp.le.s32.totalorder 2, %s12
      // Predicated region
      $region37: #{tpu_custom_call.1} parent=5 // pred_check
        %p1177 = pneg %p1176
      $region38: #{tpu_custom_call.1} parent=5 // pred_check_branch
        %1179 = sbr.rel (%p1177) target = $region40
      $region39: #{tpu_custom_call.1} parent=5 // pred_region
        %s1180 = ssub.s32 %s12, 2
        // Predicated region
        $region41: #{tpu_custom_call.1} parent=39 // pred_check
          %p1181 = pneg %p109
        $region42: #{tpu_custom_call.1} parent=39 // pred_check_branch
          %1183 = sbr.rel (%p1181) target = $region44
        $region43: #{tpu_custom_call.1} parent=39 // pred_region
          %s1184 = sand.u32 %s94, 1
          %s1185 = scalar_lea.sflag [#allocation3], %s1184
          %s1186 = sand.u32 %s94, 1
          %s1187 = smul.addr %s1186, 24
          %s1188 = scalar_lea.vmem [#allocation2], %s1187
          %1190 = dma.done %s1185, 384
        $region44: #{tpu_custom_call.1} parent=39 // pred_fallthru
          _
      $region40: #{tpu_custom_call.1} parent=5 // pred_fallthru
        _
    $region6: #{tpu_custom_call.1} parent=1 // loop_footer
      %s16 = sadd.s32 1, %s12
    $region7: #{tpu_custom_call.1} parent=1 // loop_footer_branch
      %11 = sbr.rel target = $region3
    $region8: #{tpu_custom_call.1} parent=1 // loop_exit
      _
    %1191 = vsyncpa [#allocation3], 1
    %s1192 = scalar_lea.sflag [#allocation3], 1
    %1193 = vsyncpa %s1192, 1

</llo_original>
